<compile_context>
chip_gen: v6e
topology: v6e:2x2x1
jax: 0.10.0
libtpu: 0.0.40
codegen_flags: <defaults>
</compile_context>

<pallas_src>
import numpy as np
import jax
import jax.numpy as jnp
from jax.experimental import pallas as pl
from jax.experimental.pallas import tpu as pltpu


def _transition_kernel(x_ref, scale_ref, shift_ref, w_ref, o_ref):
    """One (batch-block, spatial-tile) grid step.

    x_ref:     (nb, 4, T, C)   four 2x2-pooling phases; C on the lane dim.
    scale_ref: (1, C)          0.25 * gamma / sqrt(var + eps)
    shift_ref: (1, C)          0.25 * (beta - mean * gamma / sqrt(var + eps))
    w_ref:     (C, Cout_pad)   1x1 conv weight (lane-padded if needed)
    o_ref:     (nb, T, Cout_pad)
    """
    nb, _, t, c = x_ref.shape
    scale = scale_ref[...]                       # (1, C) -> lane broadcast
    shift = shift_ref[...]

    def bn_relu(v):                              # v: (nb, T, C)
        return jnp.maximum(v.astype(jnp.float32) * scale + shift, 0.0)

    # 2x2 average pool of the BN+ReLU activations = sum of the four phases
    # (the 1/4 factor is folded into scale/shift).  Pure VPU work.
    p = (bn_relu(x_ref[:, 0, :, :]) + bn_relu(x_ref[:, 1, :, :]) +
         bn_relu(x_ref[:, 2, :, :]) + bn_relu(x_ref[:, 3, :, :]))

    # 1x1 conv AFTER pooling (they commute): (nb*T, C) @ (C, Cout) on the MXU.
    w = w_ref[...]
    out = jnp.dot(p.reshape(nb * t, c).astype(w.dtype), w,
                  preferred_element_type=jnp.float32)
    o_ref[...] = out.reshape(o_ref.shape).astype(o_ref.dtype)


def _choose_tiling(n, ho, wo, c, cout_pad, in_itemsize, out_itemsize=4,
                   budget_bytes=6 << 20):
    """Pick (nb, tho): images per block and output rows per block.

    Constraints: nb | N, tho | Ho, and tho*Wo (block second-to-last dim) is a
    multiple of 8 or the full Ho*Wo.  Prefer the largest block that fits the
    per-block byte budget while leaving >= 2 grid steps for pipelining and
    megacore sharding.  If a full image fits the budget, block over batch
    (handles late-stage transitions where the spatial axis collapses).
    """
    def block_bytes(nb, tho):
        t = tho * wo
        return nb * t * (4 * c * in_itemsize + cout_pad * out_itemsize)

    if block_bytes(1, ho) <= budget_bytes:
        nb_cands = [d for d in range(1, n + 1)
                    if n % d == 0 and block_bytes(d, ho) <= budget_bytes]
        piped = [d for d in nb_cands if (n // d) >= 2]
        return (max(piped) if piped else max(nb_cands)), ho

    tho_cands = [d for d in range(1, ho + 1)
                 if ho % d == 0 and ((d * wo) % 8 == 0 or d == ho)]
    fitting = [d for d in tho_cands if block_bytes(1, d) <= budget_bytes]
    piped = [d for d in fitting if (ho // d) >= 2]
    if piped:
        return 1, max(piped)
    if fitting:
        return 1, max(fitting)
    return 1, min(tho_cands)


def transition_forward(x_nchw, gamma, beta, conv_w, eps=1e-5,
                       use_bf16=False, budget_bytes=6 << 20):
    """x_nchw: (N, C, H, W).  conv_w: (Cout, C, 1, 1) (bias-free 1x1 conv)."""
    n, c, h, w = x_nchw.shape
    assert h % 2 == 0 and w % 2 == 0, "2x2 avg-pool needs even H and W"
    cout = conv_w.shape[0]
    ho, wo = h // 2, w // 2
    cout_pad = cout if cout % 128 == 0 else ((cout + 127) // 128) * 128

    x32 = x_nchw.astype(jnp.float32)

    # (N,C,H,W) -> (N,C,Ho,2,Wo,2) [free] -> (N,2,2,Ho,Wo,C) [one transpose]
    #           -> (N,4,Ho*Wo,C)   [free]  : the four 2x2-pooling phase slabs,
    # channels last so C is the lane dim inside the kernel.
    x_ph = jnp.transpose(
        x32.reshape(n, c, ho, 2, wo, 2), (0, 3, 5, 2, 4, 1)
    ).reshape(n, 4, ho * wo, c)

    # Training-mode batch statistics, single pass (E[x], E[x^2]) so the
    # reduction fuses with the transpose materialization.  Biased variance.
    mean = jnp.mean(x_ph, axis=(0, 1, 2))
    mean_sq = jnp.mean(jnp.square(x_ph), axis=(0, 1, 2))
    var = jnp.maximum(mean_sq - jnp.square(mean), 0.0)

    inv_std = gamma.astype(jnp.float32) / jnp.sqrt(var + eps)
    # Fold the 2x2-avg-pool 1/4 factor into the BN affine (ReLU is positively
    # homogeneous, so 0.25*relu(a) == relu(0.25*a)).
    scale = (0.25 * inv_std).reshape(1, c).astype(jnp.float32)
    shift = (0.25 * (beta.astype(jnp.float32) - mean * inv_std)
             ).reshape(1, c).astype(jnp.float32)

    w_mat = conv_w.reshape(cout, c).T.astype(jnp.float32)        # (C, Cout)
    if cout_pad != cout:
        # Lane-pad so the output block is a multiple of 128 lanes (unmasked
        # vector stores).  Padded columns are zero and sliced off afterwards.
        w_mat = jnp.pad(w_mat, ((0, 0), (0, cout_pad - cout)))

    in_dtype = jnp.bfloat16 if use_bf16 else jnp.float32
    x_in = x_ph.astype(in_dtype)
    w_in = w_mat.astype(in_dtype)

    nb, tho = _choose_tiling(n, ho, wo, c, cout_pad,
                             jnp.dtype(in_dtype).itemsize,
                             budget_bytes=budget_bytes)
    t = tho * wo
    grid = (n // nb, ho // tho)

    out_flat = pl.pallas_call(
        _transition_kernel,
        out_shape=jax.ShapeDtypeStruct((n, ho * wo, cout_pad), jnp.float32),
        grid_spec=pltpu.PrefetchScalarGridSpec(
            num_scalar_prefetch=0,
            grid=grid,
            in_specs=[
                pl.BlockSpec((nb, 4, t, c), lambda b, s: (b, 0, s, 0)),
                pl.BlockSpec((1, c), lambda b, s: (0, 0)),
                pl.BlockSpec((1, c), lambda b, s: (0, 0)),
                pl.BlockSpec((c, cout_pad), lambda b, s: (0, 0)),
            ],
            out_specs=pl.BlockSpec((nb, t, cout_pad), lambda b, s: (b, s, 0)),
        ),
        compiler_params=pltpu.CompilerParams(
            dimension_semantics=("parallel", "parallel"),
            # ~6 MiB double-buffered blocks + resident weight/scale fit easily;
            # 48 MiB stays below v7x's 64 MiB physical VMEM with headroom.
            vmem_limit_bytes=48 * 1024 * 1024,
        ),
    )(x_in, scale, shift, w_in)

    if cout_pad != cout:
        out_flat = out_flat[:, :, :cout]

    # (N, Ho*Wo, Cout) -> NCHW
    return jnp.transpose(out_flat.reshape(n, ho, wo, cout), (0, 3, 1, 2))


def _reference_forward(x_nchw, gamma, beta, conv_w, eps=1e-5):
    mean = jnp.mean(x_nchw, axis=(0, 2, 3))
    var = jnp.mean((x_nchw - mean[None, :, None, None]) ** 2, axis=(0, 2, 3))
    xn = (x_nchw - mean[None, :, None, None]) / jnp.sqrt(var + eps)[None, :, None, None]
    y = jax.nn.relu(xn * gamma[None, :, None, None] + beta[None, :, None, None])
    z = jnp.einsum('nchw,oc->nohw', y,
                   conv_w.reshape(conv_w.shape[0], conv_w.shape[1]))
    n, o, h, w = z.shape
    z = z.reshape(n, o, h // 2, 2, w // 2, 2).mean(axis=(3, 5))
    return z


if __name__ == "__main__":
    key = jax.random.PRNGKey(0)
    k1, k2, k3, k4 = jax.random.split(key, 4)

    N, C, H, W = 2, 4, 16, 16      # nChannels = 4
    COUT = 2                       # nOutChannels = 2

    x = jax.random.normal(k1, (N, C, H, W), dtype=jnp.float32)
    gamma = 1.0 + 0.1 * jax.random.normal(k2, (C,), dtype=jnp.float32)
    beta = 0.05 * jax.random.normal(k3, (C,), dtype=jnp.float32)
    conv_w = 0.1 * jax.random.normal(k4, (COUT, C, 1, 1), dtype=jnp.float32)

    fwd = jax.jit(transition_forward)          # f32 path for tight validation
    out = jax.block_until_ready(fwd(x, gamma, beta, conv_w))
    ref = _reference_forward(x, gamma, beta, conv_w)

    assert out.shape == (N, COUT, H // 2, W // 2), out.shape
    np.testing.assert_allclose(np.asarray(out), np.asarray(ref),
                               rtol=1e-3, atol=1e-4)
    print("KERNEL_OK")
</pallas_src>

<mosaic_0001>
module attributes {stable_mosaic.version = 11 : i64} {
  func.func @_transition_kernel(%arg0: i32, %arg1: i32, %arg2: memref<1x4x64x4xf32, #tpu.memory_space<vmem>>, %arg3: memref<1x4xf32, #tpu.memory_space<vmem>>, %arg4: memref<1x4xf32, #tpu.memory_space<vmem>>, %arg5: memref<4x128xf32, #tpu.memory_space<vmem>>, %arg6: memref<1x64x128xf32, #tpu.memory_space<vmem>>) attributes {dimension_semantics = [#tpu.dimension_semantics<parallel>, #tpu.dimension_semantics<parallel>], iteration_bounds = array<i64: 2, 1>, scalar_prefetch = 0 : i64, scratch_operands = 0 : i64, tpu.core_type = #tpu.core_type<tc>, window_params = [{transform_indices = @transform_0, window_bounds = array<i64: 1, 4, 64, 4>}, {pipeline_mode = #tpu.pipeline_mode<synchronous>, transform_indices = @transform_1, window_bounds = array<i64: 1, 4>}, {pipeline_mode = #tpu.pipeline_mode<synchronous>, transform_indices = @transform_2, window_bounds = array<i64: 1, 4>}, {pipeline_mode = #tpu.pipeline_mode<synchronous>, transform_indices = @transform_3, window_bounds = array<i64: 4, 128>}, {transform_indices = @transform_4, window_bounds = array<i64: 1, 64, 128>}]} {
    %c0 = arith.constant 0 : index
    %c0_0 = arith.constant 0 : index
    %0 = vector.load %arg3[%c0, %c0_0] : memref<1x4xf32, #tpu.memory_space<vmem>>, vector<1x4xf32>
    %c0_1 = arith.constant 0 : index
    %c0_2 = arith.constant 0 : index
    %1 = vector.load %arg4[%c0_1, %c0_2] : memref<1x4xf32, #tpu.memory_space<vmem>>, vector<1x4xf32>
    %c0_3 = arith.constant 0 : index
    %c0_4 = arith.constant 0 : index
    %c0_5 = arith.constant 0 : index
    %c0_6 = arith.constant 0 : index
    %2 = vector.load %arg2[%c0_3, %c0_4, %c0_5, %c0_6] : memref<1x4x64x4xf32, #tpu.memory_space<vmem>>, vector<1x1x64x4xf32>
    %3 = vector.shape_cast %2 : vector<1x1x64x4xf32> to vector<1x64x4xf32>
    %4 = vector.shape_cast %0 : vector<1x4xf32> to vector<1x1x4xf32>
    %5 = vector.broadcast %4 : vector<1x1x4xf32> to vector<1x64x4xf32>
    %6 = arith.mulf %3, %5 : vector<1x64x4xf32>
    %7 = vector.shape_cast %1 : vector<1x4xf32> to vector<1x1x4xf32>
    %8 = vector.broadcast %7 : vector<1x1x4xf32> to vector<1x64x4xf32>
    %9 = arith.addf %6, %8 : vector<1x64x4xf32>
    %cst = arith.constant 0.000000e+00 : f32
    %10 = vector.broadcast %cst : f32 to vector<1x64x4xf32>
    %11 = arith.maximumf %9, %10 : vector<1x64x4xf32>
    %c0_7 = arith.constant 0 : index
    %c1 = arith.constant 1 : index
    %c0_8 = arith.constant 0 : index
    %c0_9 = arith.constant 0 : index
    %12 = vector.load %arg2[%c0_7, %c1, %c0_8, %c0_9] : memref<1x4x64x4xf32, #tpu.memory_space<vmem>>, vector<1x1x64x4xf32>
    %13 = vector.shape_cast %12 : vector<1x1x64x4xf32> to vector<1x64x4xf32>
    %14 = vector.shape_cast %0 : vector<1x4xf32> to vector<1x1x4xf32>
    %15 = vector.broadcast %14 : vector<1x1x4xf32> to vector<1x64x4xf32>
    %16 = arith.mulf %13, %15 : vector<1x64x4xf32>
    %17 = vector.shape_cast %1 : vector<1x4xf32> to vector<1x1x4xf32>
    %18 = vector.broadcast %17 : vector<1x1x4xf32> to vector<1x64x4xf32>
    %19 = arith.addf %16, %18 : vector<1x64x4xf32>
    %cst_10 = arith.constant 0.000000e+00 : f32
    %20 = vector.broadcast %cst_10 : f32 to vector<1x64x4xf32>
    %21 = arith.maximumf %19, %20 : vector<1x64x4xf32>
    %22 = arith.addf %11, %21 : vector<1x64x4xf32>
    %c0_11 = arith.constant 0 : index
    %c2 = arith.constant 2 : index
    %c0_12 = arith.constant 0 : index
    %c0_13 = arith.constant 0 : index
    %23 = vector.load %arg2[%c0_11, %c2, %c0_12, %c0_13] : memref<1x4x64x4xf32, #tpu.memory_space<vmem>>, vector<1x1x64x4xf32>
    %24 = vector.shape_cast %23 : vector<1x1x64x4xf32> to vector<1x64x4xf32>
    %25 = vector.shape_cast %0 : vector<1x4xf32> to vector<1x1x4xf32>
    %26 = vector.broadcast %25 : vector<1x1x4xf32> to vector<1x64x4xf32>
    %27 = arith.mulf %24, %26 : vector<1x64x4xf32>
    %28 = vector.shape_cast %1 : vector<1x4xf32> to vector<1x1x4xf32>
    %29 = vector.broadcast %28 : vector<1x1x4xf32> to vector<1x64x4xf32>
    %30 = arith.addf %27, %29 : vector<1x64x4xf32>
    %cst_14 = arith.constant 0.000000e+00 : f32
    %31 = vector.broadcast %cst_14 : f32 to vector<1x64x4xf32>
    %32 = arith.maximumf %30, %31 : vector<1x64x4xf32>
    %33 = arith.addf %22, %32 : vector<1x64x4xf32>
    %c0_15 = arith.constant 0 : index
    %c3 = arith.constant 3 : index
    %c0_16 = arith.constant 0 : index
    %c0_17 = arith.constant 0 : index
    %34 = vector.load %arg2[%c0_15, %c3, %c0_16, %c0_17] : memref<1x4x64x4xf32, #tpu.memory_space<vmem>>, vector<1x1x64x4xf32>
    %35 = vector.shape_cast %34 : vector<1x1x64x4xf32> to vector<1x64x4xf32>
    %36 = vector.shape_cast %0 : vector<1x4xf32> to vector<1x1x4xf32>
    %37 = vector.broadcast %36 : vector<1x1x4xf32> to vector<1x64x4xf32>
    %38 = arith.mulf %35, %37 : vector<1x64x4xf32>
    %39 = vector.shape_cast %1 : vector<1x4xf32> to vector<1x1x4xf32>
    %40 = vector.broadcast %39 : vector<1x1x4xf32> to vector<1x64x4xf32>
    %41 = arith.addf %38, %40 : vector<1x64x4xf32>
    %cst_18 = arith.constant 0.000000e+00 : f32
    %42 = vector.broadcast %cst_18 : f32 to vector<1x64x4xf32>
    %43 = arith.maximumf %41, %42 : vector<1x64x4xf32>
    %44 = arith.addf %33, %43 : vector<1x64x4xf32>
    %c0_19 = arith.constant 0 : index
    %c0_20 = arith.constant 0 : index
    %45 = vector.load %arg5[%c0_19, %c0_20] : memref<4x128xf32, #tpu.memory_space<vmem>>, vector<4x128xf32>
    %46 = vector.shape_cast %44 : vector<1x64x4xf32> to vector<64x4xf32>
    %cst_21 = arith.constant dense<0.000000e+00> : vector<64x128xf32>
    %47 = tpu.matmul %46, %45, %cst_21 {dimension_numbers = #tpu.dot_dimension_numbers<[1], [0], [0], [1], [0, 0, 1, 1], [], []>} : vector<64x4xf32>, vector<4x128xf32>, vector<64x128xf32> -> vector<64x128xf32>
    %48 = vector.shape_cast %47 : vector<64x128xf32> to vector<1x64x128xf32>
    %c0_22 = arith.constant 0 : index
    %c0_23 = arith.constant 0 : index
    %c0_24 = arith.constant 0 : index
    %49 = vector.load %arg6[%c0_22, %c0_23, %c0_24] : memref<1x64x128xf32, #tpu.memory_space<vmem>>, vector<1x64x128xf32>
    tpu.vector_store %arg6[%c0_22, %c0_23, %c0_24], %48 {strides = array<i32>} : memref<1x64x128xf32, #tpu.memory_space<vmem>>, vector<1x64x128xf32>,
    return
  }
  func.func @transform_0(%arg0: i32, %arg1: i32) -> (i32, i32, i32, i32) {
    %c0_i32 = arith.constant 0 : i32
    %c0_i32_0 = arith.constant 0 : i32
    %c0_i32_1 = arith.constant 0 : i32
    return %arg0, %c0_i32, %arg1, %c0_i32_0 : i32, i32, i32, i32
  }
  func.func @transform_1(%arg0: i32, %arg1: i32) -> (i32, i32) {
    %c0_i32 = arith.constant 0 : i32
    %c0_i32_0 = arith.constant 0 : i32
    %c0_i32_1 = arith.constant 0 : i32
    return %c0_i32, %c0_i32_0 : i32, i32
  }
  func.func @transform_2(%arg0: i32, %arg1: i32) -> (i32, i32) {
    %c0_i32 = arith.constant 0 : i32
    %c0_i32_0 = arith.constant 0 : i32
    %c0_i32_1 = arith.constant 0 : i32
    return %c0_i32, %c0_i32_0 : i32, i32
  }
  func.func @transform_3(%arg0: i32, %arg1: i32) -> (i32, i32) {
    %c0_i32 = arith.constant 0 : i32
    %c0_i32_0 = arith.constant 0 : i32
    %c0_i32_1 = arith.constant 0 : i32
    return %c0_i32, %c0_i32_0 : i32, i32
  }
  func.func @transform_4(%arg0: i32, %arg1: i32) -> (i32, i32, i32) {
    %c0_i32 = arith.constant 0 : i32
    %c0_i32_0 = arith.constant 0 : i32
    return %arg0, %arg1, %c0_i32 : i32, i32, i32
  }
}

</mosaic_0001>

<llo_original>
// kernel: transition_forward.1
$region0: #{transition_forward.1}
  #allocation0 [shape = 'u32[]', space=smem, size = 0x4, offset = 0x4, fixed_abs, tag = 'smem constant byte address 0x4 - core index']
  #allocation1 [shape = 'u32[144,128]{1,0:T(1,128)}', space=vmem, size = 0x12000, scoped, tag = 'internal scratch']
  %s0 = inlined_call_operand.vmem [shape: f32[2,4,64,4], index: 0, kind: input, shape index: {}]
  %s1 = inlined_call_operand.vmem [shape: f32[1,4], index: 1, kind: input, shape index: {}]
  %s2 = inlined_call_operand.vmem [shape: f32[1,4], index: 2, kind: input, shape index: {}]
  %s3 = inlined_call_operand.vmem [shape: f32[4,128], index: 3, kind: input, shape index: {}]
  %s4 = inlined_call_operand.vmem [shape: f32[2,64,128], index: 4, kind: output, shape index: {}]
  %s5 = sld [smem:[#allocation0]]
  $region49: #{transition_forward.1} parent=0
    _
  %s7 = ssub.s32 1, %s5
  %s8 = scalar_select 0, %s7, %s5
  loop: start=0, step=1, limit=4
  $region2: #{transition_forward.1} parent=0 // loop_pre_header
    _
  $region3: #{transition_forward.1} parent=0 // loop_header
    %s10 = sphi 0, %s14
    %p11 = scmp.ge.s32.totalorder %s10, 4
    %s17 = sphi 0, %s29
    %s18 = sphi 0, %s25
    %s19 = sphi 0, %s17
    %s20 = sphi 0, %s18
    %s21 = sphi 0, %s19
    %s22 = sphi 0, %s20
    %s34 = sphi 0, %s36
    %s37 = sphi 0, %s34
    %s38 = sphi 0, %s37
    %s54 = sphi 0, %s38
    %s58 = sphi 0, %s58
    %s60 = sphi 0, %s58
    %s61 = sphi 0, %s60
    %s75 = sphi 0, %s61
    %s79 = sphi 0, %s79
    %s81 = sphi 0, %s79
    %s82 = sphi 0, %s81
    %s96 = sphi 0, %s82
    %s100 = sphi 0, %s100
    %s102 = sphi 0, %s100
    %s103 = sphi 0, %s102
    %s117 = sphi 0, %s103
    %s125 = sphi 0, %s127
    %s128 = sphi 0, %s125
    %s129 = sphi 0, %s128
    %s145 = sphi 0, %s129
  $region4: #{transition_forward.1} parent=0 // loop_header_branch
    %13 = sbr.rel (%p11) target = $region8
  $region5: #{transition_forward.1} parent=0 // loop_body
    %s15 = ssub.s32 %s10, 1
    %s16 = ssub.s32 %s10, 2
    %s23 = sadd.s32 1, %s18
    %p24 = scmp.ge.s32.totalorder %s23, 1
    %s25 = scalar_select %p24, 0, %s23
    %s26 = sadd.s32 1, %s17
    %s27 = scalar_select %p24, %s26, %s17
    %p28 = scmp.ge.s32.totalorder %s27, 2
    %s29 = scalar_select %p28, 0, %s27
    %s30 = ssub.s32 %s17, %s29
    %s31 = ssub.s32 %s18, %s25
    %s32 = sor.u32 %s30, %s31
    %p33 = scmp.eq.s32.totalorder %s32, 0
    %s35 = sadd.s32 %s34, 1
    %s36 = scalar_select %p33, %s34, %s35
    %p39 = pneg %p33
    %p40 = scmp.eq.s32.totalorder %s10, 1
    %p41 = por %p39, %p40
    %p42 = scmp.ne.s32.totalorder %s34, %s37
    %p43 = scmp.eq.s32.totalorder %s10, 0
    %p44 = por %p42, %p43
    %p45 = scmp.ne.s32.totalorder %s34, %s37
    %p46 = scmp.eq.s32.totalorder %s15, 1
    %p47 = por %p45, %p46
    %p48 = scmp.ne.s32.totalorder %s37, %s38
    %p49 = scmp.eq.s32.totalorder %s15, 0
    %p50 = por %p48, %p49
    %p51 = scmp.ne.s32.totalorder %s37, %s38
    %p52 = scmp.eq.s32.totalorder %s16, 1
    %p53 = por %p51, %p52
    %p55 = scmp.ne.s32.totalorder %s38, %s54
    %p56 = scmp.eq.s32.totalorder %s16, 0
    %p57 = por %p55, %p56
    %s59 = sadd.s32 %s58, 1
    %p62 = scmp.eq.s32.totalorder %s10, 1
    %p63 = scmp.ne.s32.totalorder %s58, %s60
    %p64 = scmp.eq.s32.totalorder %s10, 0
    %p65 = por %p63, %p64
    %p66 = scmp.ne.s32.totalorder %s58, %s60
    %p67 = scmp.eq.s32.totalorder %s15, 1
    %p68 = por %p66, %p67
    %p69 = scmp.ne.s32.totalorder %s60, %s61
    %p70 = scmp.eq.s32.totalorder %s15, 0
    %p71 = por %p69, %p70
    %p72 = scmp.ne.s32.totalorder %s60, %s61
    %p73 = scmp.eq.s32.totalorder %s16, 1
    %p74 = por %p72, %p73
    %p76 = scmp.ne.s32.totalorder %s61, %s75
    %p77 = scmp.eq.s32.totalorder %s16, 0
    %p78 = por %p76, %p77
    %s80 = sadd.s32 %s79, 1
    %p83 = scmp.eq.s32.totalorder %s10, 1
    %p84 = scmp.ne.s32.totalorder %s79, %s81
    %p85 = scmp.eq.s32.totalorder %s10, 0
    %p86 = por %p84, %p85
    %p87 = scmp.ne.s32.totalorder %s79, %s81
    %p88 = scmp.eq.s32.totalorder %s15, 1
    %p89 = por %p87, %p88
    %p90 = scmp.ne.s32.totalorder %s81, %s82
    %p91 = scmp.eq.s32.totalorder %s15, 0
    %p92 = por %p90, %p91
    %p93 = scmp.ne.s32.totalorder %s81, %s82
    %p94 = scmp.eq.s32.totalorder %s16, 1
    %p95 = por %p93, %p94
    %p97 = scmp.ne.s32.totalorder %s82, %s96
    %p98 = scmp.eq.s32.totalorder %s16, 0
    %p99 = por %p97, %p98
    %s101 = sadd.s32 %s100, 1
    %p104 = scmp.eq.s32.totalorder %s10, 1
    %p105 = scmp.ne.s32.totalorder %s100, %s102
    %p106 = scmp.eq.s32.totalorder %s10, 0
    %p107 = por %p105, %p106
    %p108 = scmp.ne.s32.totalorder %s100, %s102
    %p109 = scmp.eq.s32.totalorder %s15, 1
    %p110 = por %p108, %p109
    %p111 = scmp.ne.s32.totalorder %s102, %s103
    %p112 = scmp.eq.s32.totalorder %s15, 0
    %p113 = por %p111, %p112
    %p114 = scmp.ne.s32.totalorder %s102, %s103
    %p115 = scmp.eq.s32.totalorder %s16, 1
    %p116 = por %p114, %p115
    %p118 = scmp.ne.s32.totalorder %s103, %s117
    %p119 = scmp.eq.s32.totalorder %s16, 0
    %p120 = por %p118, %p119
    %s121 = ssub.s32 %s17, %s29
    %s122 = ssub.s32 %s18, %s25
    %s123 = sor.u32 %s121, %s122
    %p124 = scmp.eq.s32.totalorder %s123, 0
    %s126 = sadd.s32 %s125, 1
    %s127 = scalar_select %p124, %s125, %s126
    %p130 = pneg %p124
    %p131 = scmp.eq.s32.totalorder %s10, 1
    %p132 = por %p130, %p131
    %p133 = scmp.ne.s32.totalorder %s125, %s128
    %p134 = scmp.eq.s32.totalorder %s10, 0
    %p135 = por %p133, %p134
    %p136 = scmp.ne.s32.totalorder %s125, %s128
    %p137 = scmp.eq.s32.totalorder %s15, 1
    %p138 = por %p136, %p137
    %p139 = scmp.ne.s32.totalorder %s128, %s129
    %p140 = scmp.eq.s32.totalorder %s15, 0
    %p141 = por %p139, %p140
    %p142 = scmp.ne.s32.totalorder %s128, %s129
    %p143 = scmp.eq.s32.totalorder %s16, 1
    %p144 = por %p142, %p143
    %p146 = scmp.ne.s32.totalorder %s129, %s145
    %p147 = scmp.eq.s32.totalorder %s16, 0
    %p148 = por %p146, %p147
    %p149 = scmp.le.s32.totalorder 1, %s10
    %p150 = scmp.lt.s32.totalorder %s10, 3
    %p151 = pnand %p149, %p150
    %p152 = pneg %p151
    // Predicated region
    $region9: #{transition_forward.1} parent=5 // pred_check
      _
    $region10: #{transition_forward.1} parent=5 // pred_check_branch
      %154 = sbr.rel (%p151) target = $region12
    $region11: #{transition_forward.1} parent=5 // pred_region
      %s155 = ssub.s32 %s10, 1
      // Predicated region
      $region13: #{transition_forward.1} parent=11 // pred_check
        %p156 = pneg %p71
      $region14: #{transition_forward.1} parent=11 // pred_check_branch
        %158 = sbr.rel (%p156) target = $region16
      $region15: #{transition_forward.1} parent=11 // pred_region
        _
      $region16: #{transition_forward.1} parent=11 // pred_fallthru
        _
      // Predicated region
      $region17: #{transition_forward.1} parent=11 // pred_check
        %p159 = pneg %p92
      $region18: #{transition_forward.1} parent=11 // pred_check_branch
        %161 = sbr.rel (%p159) target = $region20
      $region19: #{transition_forward.1} parent=11 // pred_region
        _
      $region20: #{transition_forward.1} parent=11 // pred_fallthru
        _
      // Predicated region
      $region21: #{transition_forward.1} parent=11 // pred_check
        %p162 = pneg %p113
      $region22: #{transition_forward.1} parent=11 // pred_check_branch
        %164 = sbr.rel (%p162) target = $region24
      $region23: #{transition_forward.1} parent=11 // pred_region
        _
      $region24: #{transition_forward.1} parent=11 // pred_fallthru
        _
    $region12: #{transition_forward.1} parent=5 // pred_fallthru
      _
    %p165 = scmp.lt.s32.totalorder %s10, 2
    // Predicated region
    $region25: #{transition_forward.1} parent=5 // pred_check
      %p166 = pneg %p165
    $region26: #{transition_forward.1} parent=5 // pred_check_branch
      %168 = sbr.rel (%p166) target = $region28
    $region27: #{transition_forward.1} parent=5 // pred_region
      // Predicated region
      $region29: #{transition_forward.1} parent=27 // pred_check
        %p169 = pneg %p44
      $region30: #{transition_forward.1} parent=27 // pred_check_branch
        %171 = sbr.rel (%p169) target = $region32
      $region31: #{transition_forward.1} parent=27 // pred_region
        %s172 = smul.u32 8, %s18
        %p173 = scmp.lt.s32.totalorder %s17, 1
        %s174 = scalar_select %p173, %s17, 1
        %p175 = scmp.lt.s32.totalorder %s172, 7
        %s176 = scalar_select %p175, %s172, 7
        %s177 = smul.addr %s174, 32
        %s178 = sadd.s32 %s176, %s177
        %s179 = smul.addr %s178, 8
        %s180 = scalar_lea.vmem %s0, %s179
        %s181 = smul.u32 8, %s18
      $region32: #{transition_forward.1} parent=27 // pred_fallthru
        _
    $region28: #{transition_forward.1} parent=5 // pred_fallthru
      _
    %p182 = scmp.le.s32.totalorder 1, %s10
    %p183 = scmp.lt.s32.totalorder %s10, 3
    %p184 = pnand %p182, %p183
    %p185 = pneg %p184
    // Predicated region
    $region33: #{transition_forward.1} parent=5 // pred_check
      _
    $region34: #{transition_forward.1} parent=5 // pred_check_branch
      %187 = sbr.rel (%p184) target = $region36
    $region35: #{transition_forward.1} parent=5 // pred_region
      %s188 = ssub.s32 %s10, 1
      %s189 = smul.u32 8, %s20
      %p190 = scmp.lt.s32.totalorder %s19, 1
      %s191 = scalar_select %p190, %s19, 1
      %p192 = scmp.lt.s32.totalorder %s189, 7
      %s193 = scalar_select %p192, %s189, 7
      %s194 = smul.addr %s191, 32
      %s195 = sadd.s32 %s193, %s194
      %s196 = smul.addr %s195, 8
      %s197 = scalar_lea.vmem %s0, %s196
      %p198 = pneg %p50
      %p199 = pneg %p47
      %p200 = pneg %p71
      %p201 = pneg %p68
      %p202 = pneg %p92
      %p203 = pneg %p89
      %p204 = pneg %p113
      %p205 = pneg %p110
      %p206 = pneg %p141
      %p207 = pneg %p138
      %s208 = smul.u32 8, %s20
      %p209 = scmp.lt.s32.totalorder %s19, 1
      %s210 = scalar_select %p209, %s19, 1
      %p211 = scmp.lt.s32.totalorder %s208, 7
      %s212 = scalar_select %p211, %s208, 7
      %s213 = smul.addr %s210, 8
      %s214 = sadd.s32 %s212, %s213
      %s215 = smul.addr %s214, 8
      %s216 = scalar_lea.vmem %s4, %s215
      %s217 = smul.u32 8, %s20
      %p218 = scmp.lt.s32.totalorder %s19, 1
      %s219 = scalar_select %p218, %s19, 1
      %p220 = scmp.lt.s32.totalorder %s217, 7
      %s221 = scalar_select %p220, %s217, 7
      %s222 = smul.addr %s219, 32
      %s223 = sadd.s32 %s221, %s222
      %s224 = smul.addr %s223, 8
      %s225 = scalar_lea.vmem %s0, %s224
      %s226 = smul.u32 8, %s20
      %s227 = smul.u32 8, %s20
      %p228 = scmp.lt.s32.totalorder %s19, 1
      %s229 = scalar_select %p228, %s19, 1
      %p230 = scmp.lt.s32.totalorder %s227, 7
      %s231 = scalar_select %p230, %s227, 7
      %s232 = smul.addr %s229, 8
      %s233 = sadd.s32 %s231, %s232
      %s234 = smul.addr %s233, 8
      %s235 = scalar_lea.vmem %s4, %s234
      %s236 = smul.u32 8, %s20
      %v237 = vld [vmem:[%s1] sm:$0x1]
      %v238 = vld [vmem:[%s2] sm:$0x1]
      %v239 = vld [vmem:[%s225] sm:$0xff]
      %v240 = vld [vmem:[%s225 + $0x8] sm:$0xff]
      %v241 = vld [vmem:[%s225 + $0x10] sm:$0xff]
      %v242 = vld [vmem:[%s225 + $0x18] sm:$0xff]
      %v243 = vld [vmem:[%s225 + $0x20] sm:$0xff]
      %v244 = vld [vmem:[%s225 + $0x28] sm:$0xff]
      %v245 = vld [vmem:[%s225 + $0x30] sm:$0xff]
      %v246 = vld [vmem:[%s225 + $0x38] sm:$0xff]
      %v248 = vlaneseq
      %v249 = vshrl.u32 %v248, 7
      %v250 = vsub.s32 0, %v249
      %v251 = vrot.slane %v237, %v250
      %v253 = vmul.f32 %v239, %v251
      %v254 = vmul.f32 %v240, %v251
      %v255 = vmul.f32 %v241, %v251
      %v256 = vmul.f32 %v242, %v251
      %v257 = vmul.f32 %v243, %v251
      %v258 = vmul.f32 %v244, %v251
      %v259 = vmul.f32 %v245, %v251
      %v260 = vmul.f32 %v246, %v251
      %v262 = vlaneseq
      %v263 = vshrl.u32 %v262, 7
      %v264 = vsub.s32 0, %v263
      %v265 = vrot.slane %v238, %v264
      %v267 = vadd.f32 %v253, %v265
      %v268 = vadd.f32 %v254, %v265
      %v269 = vadd.f32 %v255, %v265
      %v270 = vadd.f32 %v256, %v265
      %v271 = vadd.f32 %v257, %v265
      %v272 = vadd.f32 %v258, %v265
      %v273 = vadd.f32 %v259, %v265
      %v274 = vadd.f32 %v260, %v265
      %v275 = vmax.f32 %v267, 0.0
      %v276 = vmax.f32 %v268, 0.0
      %v277 = vmax.f32 %v269, 0.0
      %v278 = vmax.f32 %v270, 0.0
      %v279 = vmax.f32 %v271, 0.0
      %v280 = vmax.f32 %v272, 0.0
      %v281 = vmax.f32 %v273, 0.0
      %v282 = vmax.f32 %v274, 0.0
      %s283 = scalar_lea.vmem %s225, 64
      %v284 = vld [vmem:[%s283] sm:$0xff]
      %v285 = vld [vmem:[%s283 + $0x8] sm:$0xff]
      %v286 = vld [vmem:[%s283 + $0x10] sm:$0xff]
      %v287 = vld [vmem:[%s283 + $0x18] sm:$0xff]
      %v288 = vld [vmem:[%s283 + $0x20] sm:$0xff]
      %v289 = vld [vmem:[%s283 + $0x28] sm:$0xff]
      %v290 = vld [vmem:[%s283 + $0x30] sm:$0xff]
      %v291 = vld [vmem:[%s283 + $0x38] sm:$0xff]
      %v292 = vmul.f32 %v284, %v251
      %v293 = vmul.f32 %v285, %v251
      %v294 = vmul.f32 %v286, %v251
      %v295 = vmul.f32 %v287, %v251
      %v296 = vmul.f32 %v288, %v251
      %v297 = vmul.f32 %v289, %v251
      %v298 = vmul.f32 %v290, %v251
      %v299 = vmul.f32 %v291, %v251
      %v300 = vadd.f32 %v292, %v265
      %v301 = vadd.f32 %v293, %v265
      %v302 = vadd.f32 %v294, %v265
      %v303 = vadd.f32 %v295, %v265
      %v304 = vadd.f32 %v296, %v265
      %v305 = vadd.f32 %v297, %v265
      %v306 = vadd.f32 %v298, %v265
      %v307 = vadd.f32 %v299, %v265
      %v308 = vmax.f32 %v300, 0.0
      %v309 = vmax.f32 %v301, 0.0
      %v310 = vmax.f32 %v302, 0.0
      %v311 = vmax.f32 %v303, 0.0
      %v312 = vmax.f32 %v304, 0.0
      %v313 = vmax.f32 %v305, 0.0
      %v314 = vmax.f32 %v306, 0.0
      %v315 = vmax.f32 %v307, 0.0
      %v316 = vadd.f32 %v275, %v308
      %v317 = vadd.f32 %v276, %v309
      %v318 = vadd.f32 %v277, %v310
      %v319 = vadd.f32 %v278, %v311
      %v320 = vadd.f32 %v279, %v312
      %v321 = vadd.f32 %v280, %v313
      %v322 = vadd.f32 %v281, %v314
      %v323 = vadd.f32 %v282, %v315
      %s324 = scalar_lea.vmem %s225, 128
      %v325 = vld [vmem:[%s324] sm:$0xff]
      %v326 = vld [vmem:[%s324 + $0x8] sm:$0xff]
      %v327 = vld [vmem:[%s324 + $0x10] sm:$0xff]
      %v328 = vld [vmem:[%s324 + $0x18] sm:$0xff]
      %v329 = vld [vmem:[%s324 + $0x20] sm:$0xff]
      %v330 = vld [vmem:[%s324 + $0x28] sm:$0xff]
      %v331 = vld [vmem:[%s324 + $0x30] sm:$0xff]
      %v332 = vld [vmem:[%s324 + $0x38] sm:$0xff]
      %v333 = vmul.f32 %v325, %v251
      %v334 = vmul.f32 %v326, %v251
      %v335 = vmul.f32 %v327, %v251
      %v336 = vmul.f32 %v328, %v251
      %v337 = vmul.f32 %v329, %v251
      %v338 = vmul.f32 %v330, %v251
      %v339 = vmul.f32 %v331, %v251
      %v340 = vmul.f32 %v332, %v251
      %v341 = vadd.f32 %v333, %v265
      %v342 = vadd.f32 %v334, %v265
      %v343 = vadd.f32 %v335, %v265
      %v344 = vadd.f32 %v336, %v265
      %v345 = vadd.f32 %v337, %v265
      %v346 = vadd.f32 %v338, %v265
      %v347 = vadd.f32 %v339, %v265
      %v348 = vadd.f32 %v340, %v265
      %v349 = vmax.f32 %v341, 0.0
      %v350 = vmax.f32 %v342, 0.0
      %v351 = vmax.f32 %v343, 0.0
      %v352 = vmax.f32 %v344, 0.0
      %v353 = vmax.f32 %v345, 0.0
      %v354 = vmax.f32 %v346, 0.0
      %v355 = vmax.f32 %v347, 0.0
      %v356 = vmax.f32 %v348, 0.0
      %v357 = vadd.f32 %v316, %v349
      %v358 = vadd.f32 %v317, %v350
      %v359 = vadd.f32 %v318, %v351
      %v360 = vadd.f32 %v319, %v352
      %v361 = vadd.f32 %v320, %v353
      %v362 = vadd.f32 %v321, %v354
      %v363 = vadd.f32 %v322, %v355
      %v364 = vadd.f32 %v323, %v356
      %s365 = scalar_lea.vmem %s225, 192
      %v366 = vld [vmem:[%s365] sm:$0xff]
      %v367 = vld [vmem:[%s365 + $0x8] sm:$0xff]
      %v368 = vld [vmem:[%s365 + $0x10] sm:$0xff]
      %v369 = vld [vmem:[%s365 + $0x18] sm:$0xff]
      %v370 = vld [vmem:[%s365 + $0x20] sm:$0xff]
      %v371 = vld [vmem:[%s365 + $0x28] sm:$0xff]
      %v372 = vld [vmem:[%s365 + $0x30] sm:$0xff]
      %v373 = vld [vmem:[%s365 + $0x38] sm:$0xff]
      %v374 = vmul.f32 %v366, %v251
      %v375 = vmul.f32 %v367, %v251
      %v376 = vmul.f32 %v368, %v251
      %v377 = vmul.f32 %v369, %v251
      %v378 = vmul.f32 %v370, %v251
      %v379 = vmul.f32 %v371, %v251
      %v380 = vmul.f32 %v372, %v251
      %v381 = vmul.f32 %v373, %v251
      %v382 = vadd.f32 %v374, %v265
      %v383 = vadd.f32 %v375, %v265
      %v384 = vadd.f32 %v376, %v265
      %v385 = vadd.f32 %v377, %v265
      %v386 = vadd.f32 %v378, %v265
      %v387 = vadd.f32 %v379, %v265
      %v388 = vadd.f32 %v380, %v265
      %v389 = vadd.f32 %v381, %v265
      %v390 = vmax.f32 %v382, 0.0
      %v391 = vmax.f32 %v383, 0.0
      %v392 = vmax.f32 %v384, 0.0
      %v393 = vmax.f32 %v385, 0.0
      %v394 = vmax.f32 %v386, 0.0
      %v395 = vmax.f32 %v387, 0.0
      %v396 = vmax.f32 %v388, 0.0
      %v397 = vmax.f32 %v389, 0.0
      %v398 = vadd.f32 %v357, %v390
      %v399 = vadd.f32 %v358, %v391
      %v400 = vadd.f32 %v359, %v392
      %v401 = vadd.f32 %v360, %v393
      %v402 = vadd.f32 %v361, %v394
      %v403 = vadd.f32 %v362, %v395
      %v404 = vadd.f32 %v363, %v396
      %v405 = vadd.f32 %v364, %v397
      %v406 = vld [vmem:[%s3] sm:$0xf]
      %vm407 = vcmask 31744
      %v409 = vsel %vm407, %v398, 0
      %v412 = vsel %vm407, %v399, 0
      %v415 = vsel %vm407, %v400, 0
      %v418 = vsel %vm407, %v401, 0
      %v421 = vsel %vm407, %v402, 0
      %v424 = vsel %vm407, %v403, 0
      %v427 = vsel %vm407, %v404, 0
      %v430 = vsel %vm407, %v405, 0
      %vm432 = vcmask 1043456
      %v434 = vsel %vm432, %v406, 0
      %436 = vmatprep.subr.mxu0 0.0
      %437 = vmatpush1.msra.mxu0 0.0
      %438 = vmatprep.subr.mxu0 0.0
      %439 = vmatpush1.msra.mxu0 0.0
      %440 = vmatprep.subr.mxu0 0.0
      %441 = vmatpush1.msra.mxu0 0.0
      %442 = vmatprep.subr.mxu0 0.0
      %443 = vmatpush1.msra.mxu0 0.0
      %444 = vmatprep.subr.mxu0 0.0
      %445 = vmatpush1.msra.mxu0 0.0
      %446 = vmatprep.subr.mxu0 0.0
      %447 = vmatpush1.msra.mxu0 0.0
      %448 = vmatprep.subr.mxu0 0.0
      %449 = vmatpush1.msra.mxu0 0.0
      %450 = vmatprep.subr.mxu0 0.0
      %451 = vmatpush1.msra.mxu0 0.0
      %452 = vmatprep.subr.mxu0 0.0
      %453 = vmatpush1.msra.mxu0 0.0
      %454 = vmatprep.subr.mxu0 0.0
      %455 = vmatpush1.msra.mxu0 0.0
      %456 = vmatprep.subr.mxu0 0.0
      %457 = vmatpush1.msra.mxu0 0.0
      %458 = vmatprep.subr.mxu0 0.0
      %459 = vmatpush1.msra.mxu0 0.0
      %460 = vmatprep.subr.mxu0 0.0
      %461 = vmatpush1.msra.mxu0 0.0
      %462 = vmatprep.subr.mxu0 0.0
      %463 = vmatpush1.msra.mxu0 0.0
      %464 = vmatprep.subr.mxu0 0.0
      %465 = vmatpush1.msra.mxu0 0.0
      %466 = vmatprep.subr.mxu0 0.0
      %467 = vmatpush1.msra.mxu0 %v434
      %468 = vmatprep.subr.mxu0 0.0
      %469 = vmatpush2.msra.mxu0 0.0
      %470 = vmatprep.subr.mxu0 0.0
      %471 = vmatpush2.msra.mxu0 0.0
      %472 = vmatprep.subr.mxu0 0.0
      %473 = vmatpush2.msra.mxu0 0.0
      %474 = vmatprep.subr.mxu0 0.0
      %475 = vmatpush2.msra.mxu0 0.0
      %476 = vmatprep.subr.mxu0 0.0
      %477 = vmatpush2.msra.mxu0 0.0
      %478 = vmatprep.subr.mxu0 0.0
      %479 = vmatpush2.msra.mxu0 0.0
      %480 = vmatprep.subr.mxu0 0.0
      %481 = vmatpush2.msra.mxu0 0.0
      %482 = vmatprep.subr.mxu0 0.0
      %483 = vmatpush2.msra.mxu0 0.0
      %484 = vmatprep.subr.mxu0 0.0
      %485 = vmatpush2.msra.mxu0 0.0
      %486 = vmatprep.subr.mxu0 0.0
      %487 = vmatpush2.msra.mxu0 0.0
      %488 = vmatprep.subr.mxu0 0.0
      %489 = vmatpush2.msra.mxu0 0.0
      %490 = vmatprep.subr.mxu0 0.0
      %491 = vmatpush2.msra.mxu0 0.0
      %492 = vmatprep.subr.mxu0 0.0
      %493 = vmatpush2.msra.mxu0 0.0
      %494 = vmatprep.subr.mxu0 0.0
      %495 = vmatpush2.msra.mxu0 0.0
      %496 = vmatprep.subr.mxu0 0.0
      %497 = vmatpush2.msra.mxu0 0.0
      %498 = vmatprep.subr.mxu0 0.0
      %499 = vmatpush2.msra.mxu0 0.0
      %500 = vmatprep.mubr.f32.mxu0 0.0
      %501 = vmatmul.mubr.f32.gmra.mxu0 %v409
      %v502 = vpop.f32.mrf.mxu0
      %v503 = vadd.f32 0.0, %v502
      %v504 = vpop.f32.mrf.mxu0
      %505 = vmatprep.mubr.f32.mxu0 0.0
      %506 = vmatmul.mubr.f32.gmra.mxu0 %v412
      %v507 = vpop.f32.mrf.mxu0
      %v508 = vadd.f32 0.0, %v507
      %v509 = vpop.f32.mrf.mxu0
      %510 = vmatprep.mubr.f32.mxu0 0.0
      %511 = vmatmul.mubr.f32.gmra.mxu0 %v415
      %v512 = vpop.f32.mrf.mxu0
      %v513 = vadd.f32 0.0, %v512
      %v514 = vpop.f32.mrf.mxu0
      %515 = vmatprep.mubr.f32.mxu0 0.0
      %516 = vmatmul.mubr.f32.gmra.mxu0 %v418
      %v517 = vpop.f32.mrf.mxu0
      %v518 = vadd.f32 0.0, %v517
      %v519 = vpop.f32.mrf.mxu0
      %520 = vmatprep.mubr.f32.mxu0 0.0
      %521 = vmatmul.mubr.f32.gmra.mxu0 %v421
      %v522 = vpop.f32.mrf.mxu0
      %v523 = vadd.f32 0.0, %v522
      %v524 = vpop.f32.mrf.mxu0
      %525 = vmatprep.mubr.f32.mxu0 0.0
      %526 = vmatmul.mubr.f32.gmra.mxu0 %v424
      %v527 = vpop.f32.mrf.mxu0
      %v528 = vadd.f32 0.0, %v527
      %v529 = vpop.f32.mrf.mxu0
      %530 = vmatprep.mubr.f32.mxu0 0.0
      %531 = vmatmul.mubr.f32.gmra.mxu0 %v427
      %v532 = vpop.f32.mrf.mxu0
      %v533 = vadd.f32 0.0, %v532
      %v534 = vpop.f32.mrf.mxu0
      %535 = vmatprep.mubr.f32.mxu0 0.0
      %536 = vmatmul.mubr.f32.gmra.mxu0 %v430
      %v537 = vpop.f32.mrf.mxu0
      %v538 = vadd.f32 0.0, %v537
      %v539 = vpop.f32.mrf.mxu0
      %540 = vdwg.mxu0
      %541 = vst [vmem:[%s235] sm:$0xff] %v503
      %542 = vst [vmem:[%s235 + $0x8] sm:$0xff] %v508
      %543 = vst [vmem:[%s235 + $0x10] sm:$0xff] %v513
      %544 = vst [vmem:[%s235 + $0x18] sm:$0xff] %v518
      %545 = vst [vmem:[%s235 + $0x20] sm:$0xff] %v523
      %546 = vst [vmem:[%s235 + $0x28] sm:$0xff] %v528
      %547 = vst [vmem:[%s235 + $0x30] sm:$0xff] %v533
      %548 = vst [vmem:[%s235 + $0x38] sm:$0xff] %v538
      %s549 = smul.u32 8, %s20
      %p550 = scmp.lt.s32.totalorder %s19, 1
      %s551 = scalar_select %p550, %s19, 1
      %p552 = scmp.lt.s32.totalorder %s549, 7
      %s553 = scalar_select %p552, %s549, 7
      %s554 = smul.addr %s551, 8
      %s555 = sadd.s32 %s553, %s554
      %s556 = smul.addr %s555, 8
      %s557 = scalar_lea.vmem %s4, %s556
      // Predicated region
      $region37: #{transition_forward.1} parent=35 // pred_check
        %p558 = pneg %p138
      $region38: #{transition_forward.1} parent=35 // pred_check_branch
        %560 = sbr.rel (%p558) target = $region40
      $region39: #{transition_forward.1} parent=35 // pred_region
        %s561 = smul.u32 8, %s20
      $region40: #{transition_forward.1} parent=35 // pred_fallthru
        _
    $region36: #{transition_forward.1} parent=5 // pred_fallthru
      _
    %p562 = scmp.le.s32.totalorder 2, %s10
    // Predicated region
    $region41: #{transition_forward.1} parent=5 // pred_check
      %p563 = pneg %p562
    $region42: #{transition_forward.1} parent=5 // pred_check_branch
      %565 = sbr.rel (%p563) target = $region44
    $region43: #{transition_forward.1} parent=5 // pred_region
      %s566 = ssub.s32 %s10, 2
      // Predicated region
      $region45: #{transition_forward.1} parent=43 // pred_check
        %p567 = pneg %p144
      $region46: #{transition_forward.1} parent=43 // pred_check_branch
        %569 = sbr.rel (%p567) target = $region48
      $region47: #{transition_forward.1} parent=43 // pred_region
        %s570 = smul.u32 8, %s22
        %p571 = scmp.lt.s32.totalorder %s21, 1
        %s572 = scalar_select %p571, %s21, 1
        %p573 = scmp.lt.s32.totalorder %s570, 7
        %s574 = scalar_select %p573, %s570, 7
        %s575 = smul.addr %s572, 8
        %s576 = sadd.s32 %s574, %s575
        %s577 = smul.addr %s576, 8
        %s578 = scalar_lea.vmem %s4, %s577
      $region48: #{transition_forward.1} parent=43 // pred_fallthru
        _
    $region44: #{transition_forward.1} parent=5 // pred_fallthru
      _
  $region6: #{transition_forward.1} parent=0 // loop_footer
    %s14 = sadd.s32 1, %s10
  $region7: #{transition_forward.1} parent=0 // loop_footer_branch
    %9 = sbr.rel target = $region3
  $region8: #{transition_forward.1} parent=0 // loop_exit
    _

</llo_original>
